<compile_context>
chip_gen: v6e
topology: v6e:2x2x1
jax: 0.10.0
libtpu: 0.0.40
codegen_flags: <defaults>
</compile_context>

<pallas_src>
import functools

import jax
import jax.numpy as jnp
from jax.experimental import pallas as pl
from jax.experimental.pallas import tpu as pltpu

_SUBLANE = 8


def _round_up(x, m):
    return ((x + m - 1) // m) * m


@functools.lru_cache(maxsize=1)
def _num_tensorcores():
    """2 on v7x (megacore grid sharding pays off), else 1. Fails safe to 1."""
    try:
        kind = (getattr(jax.devices()[0], "device_kind", "") or "").lower()
        if "v7" in kind or "7x" in kind:
            return 2
    except Exception:
        pass
    return 1


def _dqn_kernel(x_ref, w1_ref, b1_ref, w2_ref, b2_ref, w3_ref, b3_ref, o_ref):
    w1 = w1_ref[...]
    w2 = w2_ref[...]
    w3 = w3_ref[...]

    # In-kernel cast of x to the dot dtype (free VPU work in a mem-bound regime).
    x = x_ref[...].astype(w1.dtype)

    # latent[0]: Linear(n_obs -> h1); f32 accumulation on the MXU.
    h1 = jnp.dot(x, w1, preferred_element_type=jnp.float32) + b1_ref[...]
    # latent[1]: LeakyReLU (PyTorch default negative_slope = 0.01), f32 math.
    h1 = jnp.where(h1 > 0, h1, 0.01 * h1)

    # latent[2]: Linear(h1 -> h2)
    h2 = jnp.dot(h1.astype(w2.dtype), w2,
                 preferred_element_type=jnp.float32) + b2_ref[...]
    # F.relu(self.latent(x))
    h2 = jnp.maximum(h2, 0.0)

    # output_layer: Linear(h2 -> n_actions); unpadded (bb, n_actions) store.
    out = jnp.dot(h2.astype(w3.dtype), w3,
                  preferred_element_type=jnp.float32) + b3_ref[...]
    o_ref[...] = out.astype(o_ref.dtype)


@functools.partial(jax.jit, static_argnames=("block_b",))
def dqn_forward(x, w1, b1, w2, b2, w3, b3, *, block_b=1024):
    B, n_obs = x.shape
    h1 = w1.shape[1]
    h2 = w2.shape[1]
    n_actions = w3.shape[1]

    # Sublane multiple for the x tile depends on x's packing (f32: 8, bf16: 16).
    mult = _SUBLANE * max(1, 4 // jnp.dtype(x.dtype).itemsize)

    # Batch tile: as large as possible (amortize ~0.35us/step), but on a
    # 2-TensorCore chip cap at ceil(B/2) so the "parallel" axis has >=2 steps.
    tc = _num_tensorcores()
    bb = block_b if tc <= 1 else min(block_b, pl.cdiv(B, tc))
    bb = _round_up(max(bb, 1), mult)
    bb = min(bb, _round_up(B, mult))
    grid = (pl.cdiv(B, bb),)

    w_itemsize = jnp.dtype(w1.dtype).itemsize
    flops = 2 * B * (n_obs * h1 + h1 * h2 + h2 * n_actions)
    bytes_accessed = (
        B * n_obs * jnp.dtype(x.dtype).itemsize                 # streamed x
        + (n_obs * h1 + h1 * h2 + h2 * n_actions) * w_itemsize  # weights
        + (h1 + h2 + n_actions) * 4                             # biases
        + B * n_actions * 4                                     # output
    )

    full = lambda i: (0, 0)  # weights/biases: same full block every grid step

    out = pl.pallas_call(
        _dqn_kernel,
        out_shape=jax.ShapeDtypeStruct((B, n_actions), jnp.float32),
        grid_spec=pltpu.PrefetchScalarGridSpec(
            num_scalar_prefetch=0,
            grid=grid,
            in_specs=[
                pl.BlockSpec((bb, n_obs), lambda i: (i, 0)),
                pl.BlockSpec((n_obs, h1), full),
                pl.BlockSpec((1, h1), full),
                pl.BlockSpec((h1, h2), full),
                pl.BlockSpec((1, h2), full),
                pl.BlockSpec((h2, n_actions), full),
                pl.BlockSpec((1, n_actions), full),
            ],
            out_specs=pl.BlockSpec((bb, n_actions), lambda i: (i, 0)),
        ),
        compiler_params=pltpu.CompilerParams(
            dimension_semantics=("parallel",),
        ),
        cost_estimate=pl.CostEstimate(
            flops=flops, transcendentals=0, bytes_accessed=bytes_accessed),
    )(x, w1, b1, w2, b2, w3, b3)

    return out


def init_params(key, n_observations, hidden_size1, hidden_size2, n_actions):
    """Matches DQN._initialize_weights: weight ~ N(0, 0.01), bias = 0.
    Weights stored as (in, out) so the kernel computes x @ W + b."""
    k1, k2, k3 = jax.random.split(key, 3)
    w1 = 0.01 * jax.random.normal(k1, (n_observations, hidden_size1), jnp.float32)
    b1 = jnp.zeros((1, hidden_size1), jnp.float32)
    w2 = 0.01 * jax.random.normal(k2, (hidden_size1, hidden_size2), jnp.float32)
    b2 = jnp.zeros((1, hidden_size2), jnp.float32)
    w3 = 0.01 * jax.random.normal(k3, (hidden_size2, n_actions), jnp.float32)
    b3 = jnp.zeros((1, n_actions), jnp.float32)
    return w1, b1, w2, b2, w3, b3


def prepare_params(w1, b1, w2, b2, w3, b3, *, use_bf16=False):
    """One-time (per parameter update) weight formatting, outside the hot path.
    bf16 weights halve weight DMA and take the native MXU path on all gens
    (recommended on v5e); biases and activation math stay f32."""
    if use_bf16:
        w1 = w1.astype(jnp.bfloat16)
        w2 = w2.astype(jnp.bfloat16)
        w3 = w3.astype(jnp.bfloat16)
    return w1, b1, w2, b2, w3, b3


def reference_forward(x, w1, b1, w2, b2, w3, b3, *, dot_dtype=jnp.float32):
    f32 = jnp.float32
    h1 = jnp.dot(x.astype(dot_dtype), w1.astype(dot_dtype),
                 preferred_element_type=f32) + b1
    h1 = jnp.where(h1 > 0, h1, 0.01 * h1)
    h2 = jnp.dot(h1.astype(dot_dtype), w2.astype(dot_dtype),
                 preferred_element_type=f32) + b2
    h2 = jnp.maximum(h2, 0.0)
    return jnp.dot(h2.astype(dot_dtype), w3.astype(dot_dtype),
                   preferred_element_type=f32) + b3


if __name__ == "__main__":
    n_observations, hidden_size1, hidden_size2, n_actions = 32, 64, 32, 4

    key = jax.random.PRNGKey(0)
    kx, kp, kx2 = jax.random.split(key, 3)
    raw_params = init_params(kp, n_observations, hidden_size1, hidden_size2,
                             n_actions)
    params_f32 = prepare_params(*raw_params, use_bf16=False)
    params_bf16 = prepare_params(*raw_params, use_bf16=True)

    # 1) small batch, f32 path (tight tolerance), single grid step.
    x = jax.random.normal(kx, (8, n_observations), jnp.float32)
    out = jax.block_until_ready(dqn_forward(x, *params_f32))
    ref = reference_forward(x, *raw_params)
    assert out.shape == (8, n_actions)
    assert jnp.allclose(out, ref, atol=1e-5, rtol=1e-5)

    # 2) batch not a multiple of the tile -> exercises the ragged (masked)
    #    last block with no wrapper-side padding.
    x2 = jax.random.normal(kx2, (200, n_observations), jnp.float32)
    out2 = jax.block_until_ready(dqn_forward(x2, *params_f32, block_b=64))
    ref2 = reference_forward(x2, *raw_params)
    assert out2.shape == (200, n_actions)
    assert jnp.allclose(out2, ref2, atol=1e-5, rtol=1e-5)
    assert jnp.all(jnp.isfinite(out2))

    # 3) bf16 weights (pre-formatted once), in-kernel x cast, f32 accumulation.
    out3 = jax.block_until_ready(dqn_forward(x2, *params_bf16, block_b=64))
    ref3 = reference_forward(x2, *raw_params, dot_dtype=jnp.bfloat16)
    assert out3.shape == (200, n_actions)
    assert jnp.allclose(out3, ref3, atol=5e-5, rtol=2e-2)

    print("KERNEL_OK")
</pallas_src>

<mosaic_0001>
module attributes {stable_mosaic.version = 11 : i64} {
  func.func @_dqn_kernel(%arg0: i32, %arg1: memref<8x32xf32, #tpu.memory_space<vmem>>, %arg2: memref<32x64xf32, #tpu.memory_space<vmem>>, %arg3: memref<1x64xf32, #tpu.memory_space<vmem>>, %arg4: memref<64x32xf32, #tpu.memory_space<vmem>>, %arg5: memref<1x32xf32, #tpu.memory_space<vmem>>, %arg6: memref<32x4xf32, #tpu.memory_space<vmem>>, %arg7: memref<1x4xf32, #tpu.memory_space<vmem>>, %arg8: memref<8x4xf32, #tpu.memory_space<vmem>>) attributes {dimension_semantics = [#tpu.dimension_semantics<parallel>], iteration_bounds = array<i64: 1>, scalar_prefetch = 0 : i64, scratch_operands = 0 : i64, tpu.core_type = #tpu.core_type<tc>, window_params = [{transform_indices = @transform_0, window_bounds = array<i64: 8, 32>}, {pipeline_mode = #tpu.pipeline_mode<synchronous>, transform_indices = @transform_1, window_bounds = array<i64: 32, 64>}, {pipeline_mode = #tpu.pipeline_mode<synchronous>, transform_indices = @transform_2, window_bounds = array<i64: 1, 64>}, {pipeline_mode = #tpu.pipeline_mode<synchronous>, transform_indices = @transform_3, window_bounds = array<i64: 64, 32>}, {pipeline_mode = #tpu.pipeline_mode<synchronous>, transform_indices = @transform_4, window_bounds = array<i64: 1, 32>}, {pipeline_mode = #tpu.pipeline_mode<synchronous>, transform_indices = @transform_5, window_bounds = array<i64: 32, 4>}, {pipeline_mode = #tpu.pipeline_mode<synchronous>, transform_indices = @transform_6, window_bounds = array<i64: 1, 4>}, {transform_indices = @transform_7, window_bounds = array<i64: 8, 4>}]} {
    %c0 = arith.constant 0 : index
    %c0_0 = arith.constant 0 : index
    %0 = vector.load %arg2[%c0, %c0_0] : memref<32x64xf32, #tpu.memory_space<vmem>>, vector<32x64xf32>
    %c0_1 = arith.constant 0 : index
    %c0_2 = arith.constant 0 : index
    %1 = vector.load %arg4[%c0_1, %c0_2] : memref<64x32xf32, #tpu.memory_space<vmem>>, vector<64x32xf32>
    %c0_3 = arith.constant 0 : index
    %c0_4 = arith.constant 0 : index
    %2 = vector.load %arg6[%c0_3, %c0_4] : memref<32x4xf32, #tpu.memory_space<vmem>>, vector<32x4xf32>
    %c0_5 = arith.constant 0 : index
    %c0_6 = arith.constant 0 : index
    %3 = vector.load %arg1[%c0_5, %c0_6] : memref<8x32xf32, #tpu.memory_space<vmem>>, vector<8x32xf32>
    %cst = arith.constant dense<0.000000e+00> : vector<8x64xf32>
    %4 = tpu.matmul %3, %0, %cst {dimension_numbers = #tpu.dot_dimension_numbers<[1], [0], [0], [1], [0, 0, 1, 1], [], []>} : vector<8x32xf32>, vector<32x64xf32>, vector<8x64xf32> -> vector<8x64xf32>
    %c0_7 = arith.constant 0 : index
    %c0_8 = arith.constant 0 : index
    %5 = vector.load %arg3[%c0_7, %c0_8] : memref<1x64xf32, #tpu.memory_space<vmem>>, vector<1x64xf32>
    %6 = vector.broadcast %5 : vector<1x64xf32> to vector<8x64xf32>
    %7 = arith.addf %4, %6 : vector<8x64xf32>
    %cst_9 = arith.constant 0.000000e+00 : f32
    %8 = vector.broadcast %cst_9 : f32 to vector<8x64xf32>
    %9 = arith.cmpf ogt, %7, %8 : vector<8x64xf32>
    %cst_10 = arith.constant 0.00999999977 : f32
    %10 = vector.broadcast %cst_10 : f32 to vector<8x64xf32>
    %11 = arith.mulf %10, %7 : vector<8x64xf32>
    %12 = arith.select %9, %7, %11 : vector<8x64xi1>, vector<8x64xf32>
    %cst_11 = arith.constant dense<0.000000e+00> : vector<8x32xf32>
    %13 = tpu.matmul %12, %1, %cst_11 {dimension_numbers = #tpu.dot_dimension_numbers<[1], [0], [0], [1], [0, 0, 1, 1], [], []>} : vector<8x64xf32>, vector<64x32xf32>, vector<8x32xf32> -> vector<8x32xf32>
    %c0_12 = arith.constant 0 : index
    %c0_13 = arith.constant 0 : index
    %14 = vector.load %arg5[%c0_12, %c0_13] : memref<1x32xf32, #tpu.memory_space<vmem>>, vector<1x32xf32>
    %15 = vector.broadcast %14 : vector<1x32xf32> to vector<8x32xf32>
    %16 = arith.addf %13, %15 : vector<8x32xf32>
    %cst_14 = arith.constant 0.000000e+00 : f32
    %17 = vector.broadcast %cst_14 : f32 to vector<8x32xf32>
    %18 = arith.maximumf %16, %17 : vector<8x32xf32>
    %cst_15 = arith.constant dense<0.000000e+00> : vector<8x4xf32>
    %19 = tpu.matmul %18, %2, %cst_15 {dimension_numbers = #tpu.dot_dimension_numbers<[1], [0], [0], [1], [0, 0, 1, 1], [], []>} : vector<8x32xf32>, vector<32x4xf32>, vector<8x4xf32> -> vector<8x4xf32>
    %c0_16 = arith.constant 0 : index
    %c0_17 = arith.constant 0 : index
    %20 = vector.load %arg7[%c0_16, %c0_17] : memref<1x4xf32, #tpu.memory_space<vmem>>, vector<1x4xf32>
    %21 = vector.broadcast %20 : vector<1x4xf32> to vector<8x4xf32>
    %22 = arith.addf %19, %21 : vector<8x4xf32>
    %c0_18 = arith.constant 0 : index
    %c0_19 = arith.constant 0 : index
    %23 = vector.load %arg8[%c0_18, %c0_19] : memref<8x4xf32, #tpu.memory_space<vmem>>, vector<8x4xf32>
    tpu.vector_store %arg8[%c0_18, %c0_19], %22 {strides = array<i32>} : memref<8x4xf32, #tpu.memory_space<vmem>>, vector<8x4xf32>,
    return
  }
  func.func @transform_0(%arg0: i32) -> (i32, i32) {
    %c0_i32 = arith.constant 0 : i32
    %c0_i32_0 = arith.constant 0 : i32
    return %arg0, %c0_i32 : i32, i32
  }
  func.func @transform_1(%arg0: i32) -> (i32, i32) {
    %c0_i32 = arith.constant 0 : i32
    %c0_i32_0 = arith.constant 0 : i32
    %c0_i32_1 = arith.constant 0 : i32
    return %c0_i32, %c0_i32_0 : i32, i32
  }
  func.func @transform_2(%arg0: i32) -> (i32, i32) {
    %c0_i32 = arith.constant 0 : i32
    %c0_i32_0 = arith.constant 0 : i32
    %c0_i32_1 = arith.constant 0 : i32
    return %c0_i32, %c0_i32_0 : i32, i32
  }
  func.func @transform_3(%arg0: i32) -> (i32, i32) {
    %c0_i32 = arith.constant 0 : i32
    %c0_i32_0 = arith.constant 0 : i32
    %c0_i32_1 = arith.constant 0 : i32
    return %c0_i32, %c0_i32_0 : i32, i32
  }
  func.func @transform_4(%arg0: i32) -> (i32, i32) {
    %c0_i32 = arith.constant 0 : i32
    %c0_i32_0 = arith.constant 0 : i32
    %c0_i32_1 = arith.constant 0 : i32
    return %c0_i32, %c0_i32_0 : i32, i32
  }
  func.func @transform_5(%arg0: i32) -> (i32, i32) {
    %c0_i32 = arith.constant 0 : i32
    %c0_i32_0 = arith.constant 0 : i32
    %c0_i32_1 = arith.constant 0 : i32
    return %c0_i32, %c0_i32_0 : i32, i32
  }
  func.func @transform_6(%arg0: i32) -> (i32, i32) {
    %c0_i32 = arith.constant 0 : i32
    %c0_i32_0 = arith.constant 0 : i32
    %c0_i32_1 = arith.constant 0 : i32
    return %c0_i32, %c0_i32_0 : i32, i32
  }
  func.func @transform_7(%arg0: i32) -> (i32, i32) {
    %c0_i32 = arith.constant 0 : i32
    %c0_i32_0 = arith.constant 0 : i32
    return %arg0, %c0_i32 : i32, i32
  }
}

</mosaic_0001>

<llo_original>
// kernel: dqn_forward.1
$region0: #{dqn_forward.1}
  #allocation0 [shape = 'u32[]', space=smem, size = 0x4, offset = 0x4, fixed_abs, tag = 'smem constant byte address 0x4 - core index']
  #allocation1 [shape = 'u32[144,128]{1,0:T(1,128)}', space=vmem, size = 0x12000, scoped, tag = 'internal scratch']
  %s0 = inlined_call_operand.vmem [shape: f32[8,32], index: 0, kind: input, shape index: {}]
  %s1 = inlined_call_operand.vmem [shape: f32[32,64], index: 1, kind: input, shape index: {}]
  %s2 = inlined_call_operand.vmem [shape: f32[1,64], index: 2, kind: input, shape index: {}]
  %s3 = inlined_call_operand.vmem [shape: f32[64,32], index: 3, kind: input, shape index: {}]
  %s4 = inlined_call_operand.vmem [shape: f32[1,32], index: 4, kind: input, shape index: {}]
  %s5 = inlined_call_operand.vmem [shape: f32[32,4], index: 5, kind: input, shape index: {}]
  %s6 = inlined_call_operand.vmem [shape: f32[1,4], index: 6, kind: input, shape index: {}]
  %s7 = inlined_call_operand.vmem [shape: f32[8,4], index: 7, kind: output, shape index: {}]
  %s8 = sld [smem:[#allocation0]]
  $region38: #{dqn_forward.1} parent=0
    _
  %s10 = ssub.s32 1, %s8
  %s11 = scalar_select 0, %s10, %s8
  // Predicated region
  $region2: #{dqn_forward.1} parent=0 // pred_check
    _
  $region3: #{dqn_forward.1} parent=0 // pred_check_branch
    %13 = sbr.rel (0) target = $region5
  $region4: #{dqn_forward.1} parent=0 // pred_region
    _
  $region5: #{dqn_forward.1} parent=0 // pred_fallthru
    _
  // Predicated region
  $region6: #{dqn_forward.1} parent=0 // pred_check
    _
  $region7: #{dqn_forward.1} parent=0 // pred_check_branch
    %15 = sbr.rel (0) target = $region9
  $region8: #{dqn_forward.1} parent=0 // pred_region
    _
  $region9: #{dqn_forward.1} parent=0 // pred_fallthru
    _
  // Predicated region
  $region10: #{dqn_forward.1} parent=0 // pred_check
    _
  $region11: #{dqn_forward.1} parent=0 // pred_check_branch
    %17 = sbr.rel (0) target = $region13
  $region12: #{dqn_forward.1} parent=0 // pred_region
    _
  $region13: #{dqn_forward.1} parent=0 // pred_fallthru
    _
  // Predicated region
  $region14: #{dqn_forward.1} parent=0 // pred_check
    _
  $region15: #{dqn_forward.1} parent=0 // pred_check_branch
    %19 = sbr.rel (0) target = $region17
  $region16: #{dqn_forward.1} parent=0 // pred_region
    _
  $region17: #{dqn_forward.1} parent=0 // pred_fallthru
    _
  // Predicated region
  $region18: #{dqn_forward.1} parent=0 // pred_check
    _
  $region19: #{dqn_forward.1} parent=0 // pred_check_branch
    %21 = sbr.rel (0) target = $region21
  $region20: #{dqn_forward.1} parent=0 // pred_region
    _
  $region21: #{dqn_forward.1} parent=0 // pred_fallthru
    _
  // Predicated region
  $region22: #{dqn_forward.1} parent=0 // pred_check
    _
  $region23: #{dqn_forward.1} parent=0 // pred_check_branch
    %23 = sbr.rel (0) target = $region25
  $region24: #{dqn_forward.1} parent=0 // pred_region
    _
  $region25: #{dqn_forward.1} parent=0 // pred_fallthru
    _
  // Predicated region
  $region26: #{dqn_forward.1} parent=0 // pred_check
    _
  $region27: #{dqn_forward.1} parent=0 // pred_check_branch
    %25 = sbr.rel (0) target = $region29
  $region28: #{dqn_forward.1} parent=0 // pred_region
    _
  $region29: #{dqn_forward.1} parent=0 // pred_fallthru
    _
  %v26 = vld [vmem:[%s1] sm:$0xff]
  %v27 = vld [vmem:[%s1 + $0x8] sm:$0xff]
  %v28 = vld [vmem:[%s1 + $0x10] sm:$0xff]
  %v29 = vld [vmem:[%s1 + $0x18] sm:$0xff]
  %v30 = vld [vmem:[%s3] sm:$0xff]
  %v31 = vld [vmem:[%s3 + $0x8] sm:$0xff]
  %v32 = vld [vmem:[%s3 + $0x10] sm:$0xff]
  %v33 = vld [vmem:[%s3 + $0x18] sm:$0xff]
  %v34 = vld [vmem:[%s3 + $0x20] sm:$0xff]
  %v35 = vld [vmem:[%s3 + $0x28] sm:$0xff]
  %v36 = vld [vmem:[%s3 + $0x30] sm:$0xff]
  %v37 = vld [vmem:[%s3 + $0x38] sm:$0xff]
  %v38 = vld [vmem:[%s5] sm:$0xff]
  %v39 = vld [vmem:[%s5 + $0x8] sm:$0xff]
  %v40 = vld [vmem:[%s5 + $0x10] sm:$0xff]
  %v41 = vld [vmem:[%s5 + $0x18] sm:$0xff]
  %v42 = vld [vmem:[%s0] sm:$0xff]
  %v43 = vld [vmem:[%s2] sm:$0x1]
  %v45 = vlaneseq
  %v46 = vshrl.u32 %v45, 7
  %v47 = vsub.s32 0, %v46
  %v48 = vrot.slane %v43, %v47
  %vm50 = vcmask 261120
  %v52 = vsel %vm50, %v42, 0
  %54 = vmatprep.subr.mxu0 0.0
  %55 = vmatpush1.msra.mxu0 0.0
  %56 = vmatprep.subr.mxu0 0.0
  %57 = vmatpush1.msra.mxu0 0.0
  %58 = vmatprep.subr.mxu0 0.0
  %59 = vmatpush1.msra.mxu0 0.0
  %60 = vmatprep.subr.mxu0 0.0
  %61 = vmatpush1.msra.mxu0 0.0
  %62 = vmatprep.subr.mxu0 0.0
  %63 = vmatpush1.msra.mxu0 0.0
  %64 = vmatprep.subr.mxu0 0.0
  %65 = vmatpush1.msra.mxu0 0.0
  %66 = vmatprep.subr.mxu0 0.0
  %67 = vmatpush1.msra.mxu0 0.0
  %68 = vmatprep.subr.mxu0 0.0
  %69 = vmatpush1.msra.mxu0 0.0
  %70 = vmatprep.subr.mxu0 0.0
  %71 = vmatpush1.msra.mxu0 0.0
  %72 = vmatprep.subr.mxu0 0.0
  %73 = vmatpush1.msra.mxu0 0.0
  %74 = vmatprep.subr.mxu0 0.0
  %75 = vmatpush1.msra.mxu0 0.0
  %76 = vmatprep.subr.mxu0 0.0
  %77 = vmatpush1.msra.mxu0 0.0
  %78 = vmatprep.subr.mxu0 0.0
  %79 = vmatpush1.msra.mxu0 %v29
  %80 = vmatprep.subr.mxu0 0.0
  %81 = vmatpush1.msra.mxu0 %v28
  %82 = vmatprep.subr.mxu0 0.0
  %83 = vmatpush1.msra.mxu0 %v27
  %84 = vmatprep.subr.mxu0 0.0
  %85 = vmatpush1.msra.mxu0 %v26
  %86 = vmatprep.subr.mxu0 0.0
  %87 = vmatpush2.msra.mxu0 0.0
  %88 = vmatprep.subr.mxu0 0.0
  %89 = vmatpush2.msra.mxu0 0.0
  %90 = vmatprep.subr.mxu0 0.0
  %91 = vmatpush2.msra.mxu0 0.0
  %92 = vmatprep.subr.mxu0 0.0
  %93 = vmatpush2.msra.mxu0 0.0
  %94 = vmatprep.subr.mxu0 0.0
  %95 = vmatpush2.msra.mxu0 0.0
  %96 = vmatprep.subr.mxu0 0.0
  %97 = vmatpush2.msra.mxu0 0.0
  %98 = vmatprep.subr.mxu0 0.0
  %99 = vmatpush2.msra.mxu0 0.0
  %100 = vmatprep.subr.mxu0 0.0
  %101 = vmatpush2.msra.mxu0 0.0
  %102 = vmatprep.subr.mxu0 0.0
  %103 = vmatpush2.msra.mxu0 0.0
  %104 = vmatprep.subr.mxu0 0.0
  %105 = vmatpush2.msra.mxu0 0.0
  %106 = vmatprep.subr.mxu0 0.0
  %107 = vmatpush2.msra.mxu0 0.0
  %108 = vmatprep.subr.mxu0 0.0
  %109 = vmatpush2.msra.mxu0 0.0
  %110 = vmatprep.subr.mxu0 0.0
  %111 = vmatpush2.msra.mxu0 0.0
  %112 = vmatprep.subr.mxu0 0.0
  %113 = vmatpush2.msra.mxu0 0.0
  %114 = vmatprep.subr.mxu0 0.0
  %115 = vmatpush2.msra.mxu0 0.0
  %116 = vmatprep.subr.mxu0 0.0
  %117 = vmatpush2.msra.mxu0 0.0
  %118 = vmatprep.mubr.f32.mxu0 0.0
  %119 = vmatmul.mubr.f32.gmra.mxu0 %v52
  %v120 = vpop.f32.mrf.mxu0
  %v121 = vadd.f32 %v48, %v120
  %v122 = vpop.f32.mrf.mxu0
  %123 = vdwg.mxu0
  %vm124 = vcmp.gt.f32.partialorder %v121, 0.0
  %v125 = vmul.f32 %v121, 0.01
  %v126 = vsel %vm124, %v121, %v125
  %v127 = vld [vmem:[%s4] sm:$0x1]
  %v129 = vlaneseq
  %v130 = vshrl.u32 %v129, 7
  %v131 = vsub.s32 0, %v130
  %v132 = vrot.slane %v127, %v131
  %vm134 = vcmask 523264
  %v136 = vsel %vm134, %v126, 0
  %138 = vmatprep.subr.mxu0 0.0
  %139 = vmatpush1.msra.mxu0 0.0
  %140 = vmatprep.subr.mxu0 0.0
  %141 = vmatpush1.msra.mxu0 0.0
  %142 = vmatprep.subr.mxu0 0.0
  %143 = vmatpush1.msra.mxu0 0.0
  %144 = vmatprep.subr.mxu0 0.0
  %145 = vmatpush1.msra.mxu0 0.0
  %146 = vmatprep.subr.mxu0 0.0
  %147 = vmatpush1.msra.mxu0 0.0
  %148 = vmatprep.subr.mxu0 0.0
  %149 = vmatpush1.msra.mxu0 0.0
  %150 = vmatprep.subr.mxu0 0.0
  %151 = vmatpush1.msra.mxu0 0.0
  %152 = vmatprep.subr.mxu0 0.0
  %153 = vmatpush1.msra.mxu0 0.0
  %154 = vmatprep.subr.mxu0 0.0
  %155 = vmatpush1.msra.mxu0 %v37
  %156 = vmatprep.subr.mxu0 0.0
  %157 = vmatpush1.msra.mxu0 %v36
  %158 = vmatprep.subr.mxu0 0.0
  %159 = vmatpush1.msra.mxu0 %v35
  %160 = vmatprep.subr.mxu0 0.0
  %161 = vmatpush1.msra.mxu0 %v34
  %162 = vmatprep.subr.mxu0 0.0
  %163 = vmatpush1.msra.mxu0 %v33
  %164 = vmatprep.subr.mxu0 0.0
  %165 = vmatpush1.msra.mxu0 %v32
  %166 = vmatprep.subr.mxu0 0.0
  %167 = vmatpush1.msra.mxu0 %v31
  %168 = vmatprep.subr.mxu0 0.0
  %169 = vmatpush1.msra.mxu0 %v30
  %170 = vmatprep.subr.mxu0 0.0
  %171 = vmatpush2.msra.mxu0 0.0
  %172 = vmatprep.subr.mxu0 0.0
  %173 = vmatpush2.msra.mxu0 0.0
  %174 = vmatprep.subr.mxu0 0.0
  %175 = vmatpush2.msra.mxu0 0.0
  %176 = vmatprep.subr.mxu0 0.0
  %177 = vmatpush2.msra.mxu0 0.0
  %178 = vmatprep.subr.mxu0 0.0
  %179 = vmatpush2.msra.mxu0 0.0
  %180 = vmatprep.subr.mxu0 0.0
  %181 = vmatpush2.msra.mxu0 0.0
  %182 = vmatprep.subr.mxu0 0.0
  %183 = vmatpush2.msra.mxu0 0.0
  %184 = vmatprep.subr.mxu0 0.0
  %185 = vmatpush2.msra.mxu0 0.0
  %186 = vmatprep.subr.mxu0 0.0
  %187 = vmatpush2.msra.mxu0 0.0
  %188 = vmatprep.subr.mxu0 0.0
  %189 = vmatpush2.msra.mxu0 0.0
  %190 = vmatprep.subr.mxu0 0.0
  %191 = vmatpush2.msra.mxu0 0.0
  %192 = vmatprep.subr.mxu0 0.0
  %193 = vmatpush2.msra.mxu0 0.0
  %194 = vmatprep.subr.mxu0 0.0
  %195 = vmatpush2.msra.mxu0 0.0
  %196 = vmatprep.subr.mxu0 0.0
  %197 = vmatpush2.msra.mxu0 0.0
  %198 = vmatprep.subr.mxu0 0.0
  %199 = vmatpush2.msra.mxu0 0.0
  %200 = vmatprep.subr.mxu0 0.0
  %201 = vmatpush2.msra.mxu0 0.0
  %202 = vmatprep.mubr.f32.mxu0 0.0
  %203 = vmatmul.mubr.f32.gmra.mxu0 %v136
  %v204 = vpop.f32.mrf.mxu0
  %v205 = vadd.f32 %v132, %v204
  %v206 = vpop.f32.mrf.mxu0
  %207 = vdwg.mxu0
  %v208 = vmax.f32 %v205, 0.0
  %v209 = vld [vmem:[%s6] sm:$0x1]
  %v211 = vlaneseq
  %v212 = vshrl.u32 %v211, 7
  %v213 = vsub.s32 0, %v212
  %v214 = vrot.slane %v209, %v213
  %v217 = vsel %vm50, %v208, 0
  %219 = vmatprep.subr.mxu0 0.0
  %220 = vmatpush1.msra.mxu0 0.0
  %221 = vmatprep.subr.mxu0 0.0
  %222 = vmatpush1.msra.mxu0 0.0
  %223 = vmatprep.subr.mxu0 0.0
  %224 = vmatpush1.msra.mxu0 0.0
  %225 = vmatprep.subr.mxu0 0.0
  %226 = vmatpush1.msra.mxu0 0.0
  %227 = vmatprep.subr.mxu0 0.0
  %228 = vmatpush1.msra.mxu0 0.0
  %229 = vmatprep.subr.mxu0 0.0
  %230 = vmatpush1.msra.mxu0 0.0
  %231 = vmatprep.subr.mxu0 0.0
  %232 = vmatpush1.msra.mxu0 0.0
  %233 = vmatprep.subr.mxu0 0.0
  %234 = vmatpush1.msra.mxu0 0.0
  %235 = vmatprep.subr.mxu0 0.0
  %236 = vmatpush1.msra.mxu0 0.0
  %237 = vmatprep.subr.mxu0 0.0
  %238 = vmatpush1.msra.mxu0 0.0
  %239 = vmatprep.subr.mxu0 0.0
  %240 = vmatpush1.msra.mxu0 0.0
  %241 = vmatprep.subr.mxu0 0.0
  %242 = vmatpush1.msra.mxu0 0.0
  %243 = vmatprep.subr.mxu0 0.0
  %244 = vmatpush1.msra.mxu0 %v41
  %245 = vmatprep.subr.mxu0 0.0
  %246 = vmatpush1.msra.mxu0 %v40
  %247 = vmatprep.subr.mxu0 0.0
  %248 = vmatpush1.msra.mxu0 %v39
  %249 = vmatprep.subr.mxu0 0.0
  %250 = vmatpush1.msra.mxu0 %v38
  %251 = vmatprep.subr.mxu0 0.0
  %252 = vmatpush2.msra.mxu0 0.0
  %253 = vmatprep.subr.mxu0 0.0
  %254 = vmatpush2.msra.mxu0 0.0
  %255 = vmatprep.subr.mxu0 0.0
  %256 = vmatpush2.msra.mxu0 0.0
  %257 = vmatprep.subr.mxu0 0.0
  %258 = vmatpush2.msra.mxu0 0.0
  %259 = vmatprep.subr.mxu0 0.0
  %260 = vmatpush2.msra.mxu0 0.0
  %261 = vmatprep.subr.mxu0 0.0
  %262 = vmatpush2.msra.mxu0 0.0
  %263 = vmatprep.subr.mxu0 0.0
  %264 = vmatpush2.msra.mxu0 0.0
  %265 = vmatprep.subr.mxu0 0.0
  %266 = vmatpush2.msra.mxu0 0.0
  %267 = vmatprep.subr.mxu0 0.0
  %268 = vmatpush2.msra.mxu0 0.0
  %269 = vmatprep.subr.mxu0 0.0
  %270 = vmatpush2.msra.mxu0 0.0
  %271 = vmatprep.subr.mxu0 0.0
  %272 = vmatpush2.msra.mxu0 0.0
  %273 = vmatprep.subr.mxu0 0.0
  %274 = vmatpush2.msra.mxu0 0.0
  %275 = vmatprep.subr.mxu0 0.0
  %276 = vmatpush2.msra.mxu0 0.0
  %277 = vmatprep.subr.mxu0 0.0
  %278 = vmatpush2.msra.mxu0 0.0
  %279 = vmatprep.subr.mxu0 0.0
  %280 = vmatpush2.msra.mxu0 0.0
  %281 = vmatprep.subr.mxu0 0.0
  %282 = vmatpush2.msra.mxu0 0.0
  %283 = vmatprep.mubr.f32.mxu0 0.0
  %284 = vmatmul.mubr.f32.gmra.mxu0 %v217
  %v285 = vpop.f32.mrf.mxu0
  %v286 = vadd.f32 %v214, %v285
  %v287 = vpop.f32.mrf.mxu0
  %288 = vdwg.mxu0
  %vm289 = vcmask 31744
  %290 = vst.msk [vmem:[%s7] sm:$0xff] %vm289, %v286
  // Predicated region
  $region30: #{dqn_forward.1} parent=0 // pred_check
    _
  $region31: #{dqn_forward.1} parent=0 // pred_check_branch
    %292 = sbr.rel (0) target = $region33
  $region32: #{dqn_forward.1} parent=0 // pred_region
    _
  $region33: #{dqn_forward.1} parent=0 // pred_fallthru
    _
  // Predicated region
  $region34: #{dqn_forward.1} parent=0 // pred_check
    _
  $region35: #{dqn_forward.1} parent=0 // pred_check_branch
    %294 = sbr.rel (0) target = $region37
  $region36: #{dqn_forward.1} parent=0 // pred_region
    _
  $region37: #{dqn_forward.1} parent=0 // pred_fallthru
    _

</llo_original>
